<compile_context>
chip_gen: v6e
topology: v6e:2x2x1
jax: 0.10.0
libtpu: 0.0.40
codegen_flags: <defaults>
</compile_context>

<pallas_src>
import functools

import jax
import jax.numpy as jnp
from jax.experimental import pallas as pl
from jax.experimental.pallas import tpu as pltpu


# ---------------------------------------------------------------------------
# Helpers
# ---------------------------------------------------------------------------
def _round_up(x, m):
    return ((x + m - 1) // m) * m


def _pad2(x, rows, cols):
    r, c = x.shape
    if r == rows and c == cols:
        return x
    return jnp.pad(x, ((0, rows - r), (0, cols - c)))


def _vmem_capacity_bytes():
    try:
        return int(pltpu.get_tpu_info().vmem_capacity_bytes)
    except Exception:
        return 64 << 20  # conservative: v7x per-TensorCore VMEM


def _auto_row_tile(n, fp, hp, cd_bytes, budget):
    """Largest adj row tile whose per-step working set fits the VMEM budget."""
    tm = 16
    for cand in (1024, 512, 256, 128, 64, 32, 16):
        np_ = _round_up(max(n, cand), cand)
        per_step = (
            2 * cand * np_ * cd_bytes          # adj row tile, double-buffered
            + np_ * 2 * fp * cd_bytes          # [seq1|seq2], single resident copy
            + fp * hp * cd_bytes + hp * 4      # W + bias, resident
            + 2 * 2 * cand * hp * 4            # f32 h output tile, double-buffered
            + 2 * hp * 4                       # psum output tile
            + cand * 2 * fp * 4                # f32 temp: ax
            + 4 * cand * hp * 4                # f32 temps: g1, g2, h1, h2
        )
        if per_step <= budget:
            tm = cand
            break
    return min(tm, _round_up(n, 16))


# ---------------------------------------------------------------------------
# Pallas kernel: one adjacency row tile of the fused two-view GCN + PReLU.
# ---------------------------------------------------------------------------
def _dgi_gcn_kernel(adj_ref, scat_ref, w_ref, b_ref, alpha_ref,
                    h_ref, psum_ref, *, fp, n_valid):
    """
    adj_ref  : (tm, Np)    compute dtype  -- row tile of the padded adjacency (pipelined)
    scat_ref : (Np, 2*Fp)  compute dtype  -- [seq1 | seq2], grid-invariant
    w_ref    : (Fp, Hp)    compute dtype  -- GCN weight, grid-invariant
    b_ref    : (1, Hp)     f32            -- GCN bias, grid-invariant
    alpha_ref: (1, 1)      f32 (SMEM)     -- PReLU slope (nn.PReLU() -> single parameter)
    h_ref    : (2, tm, Hp) f32            -- stacked h_1 / h_2 row tiles
    psum_ref : (1, 1, Hp)  f32            -- per-tile column sum of h_1 (for AvgReadout)
    """
    tm = adj_ref.shape[0]
    cd = w_ref.dtype

    # Reordered contraction, both views fused: (adj @ [seq1|seq2]) @ W
    ax = jnp.dot(adj_ref[...], scat_ref[...],
                 preferred_element_type=jnp.float32)                    # [tm, 2Fp] f32
    ax1 = ax[:, :fp].astype(cd)                                         # lane-aligned split
    ax2 = ax[:, fp:].astype(cd)
    g1 = jnp.dot(ax1, w_ref[...], preferred_element_type=jnp.float32) + b_ref[...]
    g2 = jnp.dot(ax2, w_ref[...], preferred_element_type=jnp.float32) + b_ref[...]

    # PReLU in f32 (alpha is a true SMEM scalar)
    alpha = alpha_ref[0, 0]
    h1 = jnp.where(g1 > 0, g1, alpha * g1)
    h2 = jnp.where(g2 > 0, g2, alpha * g2)

    # Zero rows that are node-axis padding so the readout column-sum stays exact.
    row0 = pl.program_id(0) * tm
    rows = jax.lax.broadcasted_iota(jnp.int32, (tm, 1), 0) + row0
    valid = rows < n_valid
    h1 = jnp.where(valid, h1, 0.0)
    h2 = jnp.where(valid, h2, 0.0)

    h_ref[0, :, :] = h1
    h_ref[1, :, :] = h2
    psum_ref[0, :, :] = jnp.sum(h1, axis=0, keepdims=True)


# ---------------------------------------------------------------------------
# Wrapper
# ---------------------------------------------------------------------------
def dgi_forward(seq1, seq2, adj, w, b, alpha, bw, bb, *,
                compute_dtype=jnp.bfloat16, row_tile=None):
    """DGI 'info_max' forward.

    compute_dtype: dtype of the streamed adj / [seq1|seq2] / W operands (default bf16 --
                   halves the bandwidth-dominant N^2 bytes; use float32 for exact accuracy).
    row_tile:      override the auto-selected adjacency row tile (must be a multiple of 8
                   for f32, 16 for bf16). Auto-selection keeps the per-step working set
                   within ~60% of this chip's VMEM (64 MiB/TC on v7x, 128 MiB on v5e/v6e).
    """
    n, f = seq1.shape
    h_dim = w.shape[1]
    cd = jnp.dtype(compute_dtype)
    cd_bytes = cd.itemsize

    # Lane-aligned padding: feature / hidden dims to multiples of 128 so the in-kernel
    # [seq1|seq2] column split and the MXU K dim land on (8,128) tile boundaries.
    fp = _round_up(f, 128)
    hp = _round_up(h_dim, 128)

    vmem_cap = _vmem_capacity_bytes()
    if row_tile is None:
        tm = _auto_row_tile(n, fp, hp, cd_bytes, budget=int(vmem_cap * 0.6))
    else:
        mult = 16 if cd_bytes < 4 else 8
        assert row_tile % mult == 0, f"row_tile must be a multiple of {mult} for {cd}"
        tm = row_tile
    np_ = _round_up(n, tm)          # padded node count
    t = np_ // tm                   # grid steps (sharded across TCs on v7x)

    adj_p = _pad2(adj, np_, np_).astype(cd)
    scat = jnp.concatenate(
        [_pad2(seq1, np_, fp), _pad2(seq2, np_, fp)], axis=1).astype(cd)   # [Np, 2Fp]
    w_p = _pad2(w, fp, hp).astype(cd)
    b_p = _pad2(b.reshape(1, h_dim).astype(jnp.float32), 1, hp)
    alpha_s = jnp.asarray(alpha, jnp.float32).reshape(1, 1)

    kernel = functools.partial(_dgi_gcn_kernel, fp=fp, n_valid=n)
    out_shape = (jax.ShapeDtypeStruct((2, np_, hp), jnp.float32),          # stacked h_1/h_2
                 jax.ShapeDtypeStruct((t, 1, hp), jnp.float32))            # per-tile col sums
    out_specs = (pl.BlockSpec((2, tm, hp), lambda i: (0, i, 0)),
                 pl.BlockSpec((1, 1, hp), lambda i: (i, 0, 0)))
    cparams = pltpu.CompilerParams(
        dimension_semantics=("parallel",),
        vmem_limit_bytes=int(vmem_cap * 0.9),
    )
    smem = pl.BlockSpec(memory_space=pltpu.MemorySpace.SMEM)

    def run(single_buffer_resident):
        # Grid-invariant operands: request a single VMEM copy (no double buffer).
        res = dict(pipeline_mode=pl.Buffered(1)) if single_buffer_resident else {}
        in_specs = [
            pl.BlockSpec((tm, np_), lambda i: (i, 0)),                     # adj row tile
            pl.BlockSpec((np_, 2 * fp), lambda i: (0, 0), **res),          # [seq1|seq2]
            pl.BlockSpec((fp, hp), lambda i: (0, 0), **res),               # W
            pl.BlockSpec((1, hp), lambda i: (0, 0), **res),                # bias
            smem,                                                          # PReLU alpha
        ]
        return pl.pallas_call(
            kernel,
            grid=(t,),
            out_shape=out_shape,
            in_specs=in_specs,
            out_specs=out_specs,
            compiler_params=cparams,
        )(adj_p, scat, w_p, b_p, alpha_s)

    try:
        h_out, psum = run(single_buffer_resident=True)
    except Exception:
        # pipeline_mode=pl.Buffered(1) not supported by this jax build -> default buffering.
        h_out, psum = run(single_buffer_resident=False)

    # Tiny tail in plain XLA, all f32 (review: drop the lane-sparse [*,1] score kernel).
    h1 = h_out[0, :n, :h_dim]                                              # [N, H] f32
    h2 = h_out[1, :n, :h_dim]
    c = jax.nn.sigmoid(jnp.sum(psum[:, 0, :h_dim], axis=0) / n)           # [H]
    v = bw.astype(jnp.float32) @ c                                         # [H]
    bb_f = jnp.asarray(bb, jnp.float32)
    sc1 = h1 @ v + bb_f
    sc2 = h2 @ v + bb_f
    return jnp.concatenate([sc1, sc2])[None, :]                            # [1, 2N]


# ---------------------------------------------------------------------------
# Pure-JAX reference (direct translation of the PyTorch module)
# ---------------------------------------------------------------------------
def dgi_reference(seq1, seq2, adj, w, b, alpha, bw, bb):
    def gcn_prelu(seq):
        g = adj @ (seq @ w) + b
        return jnp.where(g > 0, g, alpha * g)
    h1 = gcn_prelu(seq1)
    h2 = gcn_prelu(seq2)
    c = jax.nn.sigmoid(jnp.mean(h1, axis=0))
    v = bw @ c
    sc1 = h1 @ v + bb
    sc2 = h2 @ v + bb
    return jnp.concatenate([sc1, sc2])[None, :]


if __name__ == "__main__":
    # Small shapes: N nodes=16, n_in=8, n_h=32
    N, n_in, n_h = 16, 8, 32
    key = jax.random.PRNGKey(0)
    k1, k2, k3, k4, k5 = jax.random.split(key, 5)

    seq1 = jax.random.normal(k1, (N, n_in), jnp.float32)
    seq2 = jax.random.normal(k2, (N, n_in), jnp.float32)
    a = jax.random.uniform(k3, (N, N), jnp.float32)
    adj = (a + a.T) / (2.0 * N)                      # symmetric, roughly normalized dense adjacency

    w = jax.random.normal(k4, (n_in, n_h), jnp.float32) * 0.1   # GCN weight
    b = jnp.zeros((n_h,), jnp.float32)                           # GCN bias
    alpha = 0.25                                                  # PReLU default init
    bw = jax.random.normal(k5, (n_h, n_h), jnp.float32) * 0.1    # nn.Bilinear weight A[0]
    bb = 0.0                                                      # nn.Bilinear bias

    ref = dgi_reference(seq1, seq2, adj, w, b, alpha, bw, bb)

    # 1) default configuration: bf16 adj/seq/W stream, f32 accumulation + f32 epilogue
    out_bf = dgi_forward(seq1, seq2, adj, w, b, alpha, bw, bb)
    jax.block_until_ready(out_bf)
    assert out_bf.shape == (1, 2 * N), out_bf.shape
    assert jnp.allclose(out_bf, ref, atol=2e-2, rtol=2e-2), (out_bf, ref)

    # 2) f32 compute path (exact-accuracy fallback)
    out_f32 = dgi_forward(seq1, seq2, adj, w, b, alpha, bw, bb, compute_dtype=jnp.float32)
    jax.block_until_ready(out_f32)
    assert jnp.allclose(out_f32, ref, atol=1e-4, rtol=1e-4), (out_f32, ref)

    # 3) multi-step pipelined grid (explicit small row tile), f32
    out_t = dgi_forward(seq1, seq2, adj, w, b, alpha, bw, bb,
                        compute_dtype=jnp.float32, row_tile=8)
    jax.block_until_ready(out_t)
    assert jnp.allclose(out_t, ref, atol=1e-4, rtol=1e-4), (out_t, ref)

    # 4) node count not a multiple of the row tile -> exercises in-kernel row masking
    Nr = 12
    ref_r = dgi_reference(seq1[:Nr], seq2[:Nr], adj[:Nr, :Nr], w, b, alpha, bw, bb)
    out_r = dgi_forward(seq1[:Nr], seq2[:Nr], adj[:Nr, :Nr], w, b, alpha, bw, bb,
                        compute_dtype=jnp.float32)
    jax.block_until_ready(out_r)
    assert out_r.shape == (1, 2 * Nr), out_r.shape
    assert jnp.allclose(out_r, ref_r, atol=1e-4, rtol=1e-4), (out_r, ref_r)

    print("KERNEL_OK")
</pallas_src>

<mosaic_0001>
module attributes {stable_mosaic.version = 11 : i64} {
  func.func @_dgi_gcn_kernel(%arg0: i32, %arg1: memref<16x16xbf16, #tpu.memory_space<vmem>>, %arg2: memref<16x256xbf16, #tpu.memory_space<vmem>>, %arg3: memref<128x128xbf16, #tpu.memory_space<vmem>>, %arg4: memref<1x128xf32, #tpu.memory_space<vmem>>, %arg5: memref<1x1xf32, #tpu.memory_space<smem>>, %arg6: memref<2x16x128xf32, #tpu.memory_space<vmem>>, %arg7: memref<1x1x128xf32, #tpu.memory_space<vmem>>) attributes {dimension_semantics = [#tpu.dimension_semantics<parallel>], iteration_bounds = array<i64: 1>, scalar_prefetch = 0 : i64, scratch_operands = 0 : i64, tpu.core_type = #tpu.core_type<tc>, window_params = [{transform_indices = @transform_0, window_bounds = array<i64: 16, 16>}, {pipeline_mode = #tpu.pipeline_mode<synchronous>, transform_indices = @transform_1, window_bounds = array<i64: 16, 256>}, {pipeline_mode = #tpu.pipeline_mode<synchronous>, transform_indices = @transform_2, window_bounds = array<i64: 128, 128>}, {pipeline_mode = #tpu.pipeline_mode<synchronous>, transform_indices = @transform_3, window_bounds = array<i64: 1, 128>}, {transform_indices = @transform_4, window_bounds = array<i64: 1, 1>}, {transform_indices = @transform_5, window_bounds = array<i64: 2, 16, 128>}, {transform_indices = @transform_6, window_bounds = array<i64: 1, 1, 128>}]} {
    %c0 = arith.constant 0 : index
    %c0_0 = arith.constant 0 : index
    %0 = vector.load %arg1[%c0, %c0_0] : memref<16x16xbf16, #tpu.memory_space<vmem>>, vector<16x16xbf16>
    %c0_1 = arith.constant 0 : index
    %c0_2 = arith.constant 0 : index
    %1 = vector.load %arg2[%c0_1, %c0_2] : memref<16x256xbf16, #tpu.memory_space<vmem>>, vector<16x256xbf16>
    %cst = arith.constant dense<0.000000e+00> : vector<16x256xf32>
    %2 = tpu.matmul %0, %1, %cst {dimension_numbers = #tpu.dot_dimension_numbers<[1], [0], [0], [1], [0, 0, 1, 1], [], []>} : vector<16x16xbf16>, vector<16x256xbf16>, vector<16x256xf32> -> vector<16x256xf32>
    %3 = vector.extract_strided_slice %2 {offsets = [0, 0], sizes = [16, 128], strides = [1, 1]} : vector<16x256xf32> to vector<16x128xf32>
    %4 = arith.truncf %3 : vector<16x128xf32> to vector<16x128xbf16>
    %5 = vector.extract_strided_slice %2 {offsets = [0, 128], sizes = [16, 128], strides = [1, 1]} : vector<16x256xf32> to vector<16x128xf32>
    %6 = arith.truncf %5 : vector<16x128xf32> to vector<16x128xbf16>
    %c0_3 = arith.constant 0 : index
    %c0_4 = arith.constant 0 : index
    %7 = vector.load %arg3[%c0_3, %c0_4] : memref<128x128xbf16, #tpu.memory_space<vmem>>, vector<128x128xbf16>
    %cst_5 = arith.constant dense<0.000000e+00> : vector<16x128xf32>
    %8 = tpu.matmul %4, %7, %cst_5 {dimension_numbers = #tpu.dot_dimension_numbers<[1], [0], [0], [1], [0, 0, 1, 1], [], []>} : vector<16x128xbf16>, vector<128x128xbf16>, vector<16x128xf32> -> vector<16x128xf32>
    %c0_6 = arith.constant 0 : index
    %c0_7 = arith.constant 0 : index
    %9 = vector.load %arg4[%c0_6, %c0_7] : memref<1x128xf32, #tpu.memory_space<vmem>>, vector<1x128xf32>
    %10 = vector.broadcast %9 : vector<1x128xf32> to vector<16x128xf32>
    %11 = arith.addf %8, %10 : vector<16x128xf32>
    %c0_8 = arith.constant 0 : index
    %c0_9 = arith.constant 0 : index
    %12 = vector.load %arg3[%c0_8, %c0_9] : memref<128x128xbf16, #tpu.memory_space<vmem>>, vector<128x128xbf16>
    %cst_10 = arith.constant dense<0.000000e+00> : vector<16x128xf32>
    %13 = tpu.matmul %6, %12, %cst_10 {dimension_numbers = #tpu.dot_dimension_numbers<[1], [0], [0], [1], [0, 0, 1, 1], [], []>} : vector<16x128xbf16>, vector<128x128xbf16>, vector<16x128xf32> -> vector<16x128xf32>
    %c0_11 = arith.constant 0 : index
    %c0_12 = arith.constant 0 : index
    %14 = vector.load %arg4[%c0_11, %c0_12] : memref<1x128xf32, #tpu.memory_space<vmem>>, vector<1x128xf32>
    %15 = vector.broadcast %14 : vector<1x128xf32> to vector<16x128xf32>
    %16 = arith.addf %13, %15 : vector<16x128xf32>
    %c0_13 = arith.constant 0 : index
    %c0_14 = arith.constant 0 : index
    %17 = memref.load %arg5[%c0_13, %c0_14] : memref<1x1xf32, #tpu.memory_space<smem>>
    %cst_15 = arith.constant 0.000000e+00 : f32
    %18 = vector.broadcast %cst_15 : f32 to vector<16x128xf32>
    %19 = arith.cmpf ogt, %11, %18 : vector<16x128xf32>
    %20 = vector.broadcast %17 : f32 to vector<16x128xf32>
    %21 = arith.mulf %20, %11 : vector<16x128xf32>
    %22 = arith.select %19, %11, %21 : vector<16x128xi1>, vector<16x128xf32>
    %cst_16 = arith.constant 0.000000e+00 : f32
    %23 = vector.broadcast %cst_16 : f32 to vector<16x128xf32>
    %24 = arith.cmpf ogt, %16, %23 : vector<16x128xf32>
    %25 = vector.broadcast %17 : f32 to vector<16x128xf32>
    %26 = arith.mulf %25, %16 : vector<16x128xf32>
    %27 = arith.select %24, %16, %26 : vector<16x128xi1>, vector<16x128xf32>
    %c16_i32 = arith.constant 16 : i32
    %28 = arith.muli %arg0, %c16_i32 : i32
    %29 = tpu.iota {dimensions = array<i32: 0>} : vector<16x1xi32>
    %30 = vector.broadcast %28 : i32 to vector<16x1xi32>
    %31 = arith.addi %29, %30 : vector<16x1xi32>
    %c16_i32_17 = arith.constant 16 : i32
    %32 = vector.broadcast %c16_i32_17 : i32 to vector<16x1xi32>
    %33 = arith.cmpi slt, %31, %32 : vector<16x1xi32>
    %cst_18 = arith.constant 0.000000e+00 : f32
    %34 = vector.shape_cast %33 : vector<16x1xi1> to vector<16x1xi1>
    %35 = vector.broadcast %34 : vector<16x1xi1> to vector<16x128xi1>
    %36 = vector.broadcast %cst_18 : f32 to vector<16x128xf32>
    %37 = arith.select %35, %22, %36 : vector<16x128xi1>, vector<16x128xf32>
    %cst_19 = arith.constant 0.000000e+00 : f32
    %38 = vector.shape_cast %33 : vector<16x1xi1> to vector<16x1xi1>
    %39 = vector.broadcast %38 : vector<16x1xi1> to vector<16x128xi1>
    %40 = vector.broadcast %cst_19 : f32 to vector<16x128xf32>
    %41 = arith.select %39, %27, %40 : vector<16x128xi1>, vector<16x128xf32>
    %c0_20 = arith.constant 0 : index
    %c0_21 = arith.constant 0 : index
    %c0_22 = arith.constant 0 : index
    %42 = vector.load %arg6[%c0_20, %c0_21, %c0_22] : memref<2x16x128xf32, #tpu.memory_space<vmem>>, vector<1x16x128xf32>
    %43 = vector.shape_cast %42 : vector<1x16x128xf32> to vector<16x128xf32>
    %44 = vector.shape_cast %37 : vector<16x128xf32> to vector<1x16x128xf32>
    tpu.vector_store %arg6[%c0_20, %c0_21, %c0_22], %44 {strides = array<i32>} : memref<2x16x128xf32, #tpu.memory_space<vmem>>, vector<1x16x128xf32>,
    %c1 = arith.constant 1 : index
    %c0_23 = arith.constant 0 : index
    %c0_24 = arith.constant 0 : index
    %45 = vector.load %arg6[%c1, %c0_23, %c0_24] : memref<2x16x128xf32, #tpu.memory_space<vmem>>, vector<1x16x128xf32>
    %46 = vector.shape_cast %45 : vector<1x16x128xf32> to vector<16x128xf32>
    %47 = vector.shape_cast %41 : vector<16x128xf32> to vector<1x16x128xf32>
    tpu.vector_store %arg6[%c1, %c0_23, %c0_24], %47 {strides = array<i32>} : memref<2x16x128xf32, #tpu.memory_space<vmem>>, vector<1x16x128xf32>,
    %cst_25 = arith.constant dense<0.000000e+00> : vector<128xf32>
    %48 = vector.multi_reduction <add>, %37, %cst_25 [0] : vector<16x128xf32> to vector<128xf32>
    %49 = vector.shape_cast %48 : vector<128xf32> to vector<1x128xf32>
    %c0_26 = arith.constant 0 : index
    %c0_27 = arith.constant 0 : index
    %c0_28 = arith.constant 0 : index
    %50 = vector.load %arg7[%c0_26, %c0_27, %c0_28] : memref<1x1x128xf32, #tpu.memory_space<vmem>>, vector<1x1x128xf32>
    %51 = vector.shape_cast %50 : vector<1x1x128xf32> to vector<1x128xf32>
    %52 = vector.shape_cast %49 : vector<1x128xf32> to vector<1x1x128xf32>
    tpu.vector_store %arg7[%c0_26, %c0_27, %c0_28], %52 {strides = array<i32>} : memref<1x1x128xf32, #tpu.memory_space<vmem>>, vector<1x1x128xf32>,
    return
  }
  func.func @transform_0(%arg0: i32) -> (i32, i32) {
    %c0_i32 = arith.constant 0 : i32
    %c0_i32_0 = arith.constant 0 : i32
    return %arg0, %c0_i32 : i32, i32
  }
  func.func @transform_1(%arg0: i32) -> (i32, i32) {
    %c0_i32 = arith.constant 0 : i32
    %c0_i32_0 = arith.constant 0 : i32
    %c0_i32_1 = arith.constant 0 : i32
    return %c0_i32, %c0_i32_0 : i32, i32
  }
  func.func @transform_2(%arg0: i32) -> (i32, i32) {
    %c0_i32 = arith.constant 0 : i32
    %c0_i32_0 = arith.constant 0 : i32
    %c0_i32_1 = arith.constant 0 : i32
    return %c0_i32, %c0_i32_0 : i32, i32
  }
  func.func @transform_3(%arg0: i32) -> (i32, i32) {
    %c0_i32 = arith.constant 0 : i32
    %c0_i32_0 = arith.constant 0 : i32
    %c0_i32_1 = arith.constant 0 : i32
    return %c0_i32, %c0_i32_0 : i32, i32
  }
  func.func @transform_4(%arg0: i32) -> (i32, i32) {
    %c0_i32 = arith.constant 0 : i32
    %c0_i32_0 = arith.constant 0 : i32
    %c0_i32_1 = arith.constant 0 : i32
    return %c0_i32, %c0_i32_0 : i32, i32
  }
  func.func @transform_5(%arg0: i32) -> (i32, i32, i32) {
    %c0_i32 = arith.constant 0 : i32
    %c0_i32_0 = arith.constant 0 : i32
    %c0_i32_1 = arith.constant 0 : i32
    return %c0_i32, %arg0, %c0_i32_0 : i32, i32, i32
  }
  func.func @transform_6(%arg0: i32) -> (i32, i32, i32) {
    %c0_i32 = arith.constant 0 : i32
    %c0_i32_0 = arith.constant 0 : i32
    %c0_i32_1 = arith.constant 0 : i32
    return %arg0, %c0_i32, %c0_i32_0 : i32, i32, i32
  }
}

module attributes {stable_mosaic.version = 11 : i64} {
  func.func @_dgi_gcn_kernel(%arg0: i32, %arg1: memref<16x16xbf16, #tpu.memory_space<vmem>>, %arg2: memref<16x256xbf16, #tpu.memory_space<vmem>>, %arg3: memref<128x128xbf16, #tpu.memory_space<vmem>>, %arg4: memref<1x128xf32, #tpu.memory_space<vmem>>, %arg5: memref<1x1xf32, #tpu.memory_space<smem>>, %arg6: memref<2x16x128xf32, #tpu.memory_space<vmem>>, %arg7: memref<1x1x128xf32, #tpu.memory_space<vmem>>) attributes {dimension_semantics = [#tpu.dimension_semantics<parallel>], iteration_bounds = array<i64: 1>, scalar_prefetch = 0 : i64, scratch_operands = 0 : i64, tpu.core_type = #tpu.core_type<tc>, window_params = [{transform_indices = @transform_0, window_bounds = array<i64: 16, 16>}, {pipeline_mode = #tpu.pipeline_mode<synchronous>, transform_indices = @transform_1, window_bounds = array<i64: 16, 256>}, {pipeline_mode = #tpu.pipeline_mode<synchronous>, transform_indices = @transform_2, window_bounds = array<i64: 128, 128>}, {pipeline_mode = #tpu.pipeline_mode<synchronous>, transform_indices = @transform_3, window_bounds = array<i64: 1, 128>}, {transform_indices = @transform_4, window_bounds = array<i64: 1, 1>}, {transform_indices = @transform_5, window_bounds = array<i64: 2, 16, 128>}, {transform_indices = @transform_6, window_bounds = array<i64: 1, 1, 128>}]} {
    %c0 = arith.constant 0 : index
    %c0_0 = arith.constant 0 : index
    %0 = vector.load %arg1[%c0, %c0_0] : memref<16x16xbf16, #tpu.memory_space<vmem>>, vector<16x16xbf16>
    %c0_1 = arith.constant 0 : index
    %c0_2 = arith.constant 0 : index
    %1 = vector.load %arg2[%c0_1, %c0_2] : memref<16x256xbf16, #tpu.memory_space<vmem>>, vector<16x256xbf16>
    %cst = arith.constant dense<0.000000e+00> : vector<16x256xf32>
    %2 = tpu.matmul %0, %1, %cst {dimension_numbers = #tpu.dot_dimension_numbers<[1], [0], [0], [1], [0, 0, 1, 1], [], []>} : vector<16x16xbf16>, vector<16x256xbf16>, vector<16x256xf32> -> vector<16x256xf32>
    %3 = vector.extract_strided_slice %2 {offsets = [0, 0], sizes = [16, 128], strides = [1, 1]} : vector<16x256xf32> to vector<16x128xf32>
    %4 = arith.truncf %3 : vector<16x128xf32> to vector<16x128xbf16>
    %5 = vector.extract_strided_slice %2 {offsets = [0, 128], sizes = [16, 128], strides = [1, 1]} : vector<16x256xf32> to vector<16x128xf32>
    %6 = arith.truncf %5 : vector<16x128xf32> to vector<16x128xbf16>
    %c0_3 = arith.constant 0 : index
    %c0_4 = arith.constant 0 : index
    %7 = vector.load %arg3[%c0_3, %c0_4] : memref<128x128xbf16, #tpu.memory_space<vmem>>, vector<128x128xbf16>
    %cst_5 = arith.constant dense<0.000000e+00> : vector<16x128xf32>
    %8 = tpu.matmul %4, %7, %cst_5 {dimension_numbers = #tpu.dot_dimension_numbers<[1], [0], [0], [1], [0, 0, 1, 1], [], []>} : vector<16x128xbf16>, vector<128x128xbf16>, vector<16x128xf32> -> vector<16x128xf32>
    %c0_6 = arith.constant 0 : index
    %c0_7 = arith.constant 0 : index
    %9 = vector.load %arg4[%c0_6, %c0_7] : memref<1x128xf32, #tpu.memory_space<vmem>>, vector<1x128xf32>
    %10 = vector.broadcast %9 : vector<1x128xf32> to vector<16x128xf32>
    %11 = arith.addf %8, %10 : vector<16x128xf32>
    %c0_8 = arith.constant 0 : index
    %c0_9 = arith.constant 0 : index
    %12 = vector.load %arg3[%c0_8, %c0_9] : memref<128x128xbf16, #tpu.memory_space<vmem>>, vector<128x128xbf16>
    %cst_10 = arith.constant dense<0.000000e+00> : vector<16x128xf32>
    %13 = tpu.matmul %6, %12, %cst_10 {dimension_numbers = #tpu.dot_dimension_numbers<[1], [0], [0], [1], [0, 0, 1, 1], [], []>} : vector<16x128xbf16>, vector<128x128xbf16>, vector<16x128xf32> -> vector<16x128xf32>
    %c0_11 = arith.constant 0 : index
    %c0_12 = arith.constant 0 : index
    %14 = vector.load %arg4[%c0_11, %c0_12] : memref<1x128xf32, #tpu.memory_space<vmem>>, vector<1x128xf32>
    %15 = vector.broadcast %14 : vector<1x128xf32> to vector<16x128xf32>
    %16 = arith.addf %13, %15 : vector<16x128xf32>
    %c0_13 = arith.constant 0 : index
    %c0_14 = arith.constant 0 : index
    %17 = memref.load %arg5[%c0_13, %c0_14] : memref<1x1xf32, #tpu.memory_space<smem>>
    %cst_15 = arith.constant 0.000000e+00 : f32
    %18 = vector.broadcast %cst_15 : f32 to vector<16x128xf32>
    %19 = arith.cmpf ogt, %11, %18 : vector<16x128xf32>
    %20 = vector.broadcast %17 : f32 to vector<16x128xf32>
    %21 = arith.mulf %20, %11 : vector<16x128xf32>
    %22 = arith.select %19, %11, %21 : vector<16x128xi1>, vector<16x128xf32>
    %cst_16 = arith.constant 0.000000e+00 : f32
    %23 = vector.broadcast %cst_16 : f32 to vector<16x128xf32>
    %24 = arith.cmpf ogt, %16, %23 : vector<16x128xf32>
    %25 = vector.broadcast %17 : f32 to vector<16x128xf32>
    %26 = arith.mulf %25, %16 : vector<16x128xf32>
    %27 = arith.select %24, %16, %26 : vector<16x128xi1>, vector<16x128xf32>
    %c16_i32 = arith.constant 16 : i32
    %28 = arith.muli %arg0, %c16_i32 : i32
    %29 = tpu.iota {dimensions = array<i32: 0>} : vector<16x1xi32>
    %30 = vector.broadcast %28 : i32 to vector<16x1xi32>
    %31 = arith.addi %29, %30 : vector<16x1xi32>
    %c16_i32_17 = arith.constant 16 : i32
    %32 = vector.broadcast %c16_i32_17 : i32 to vector<16x1xi32>
    %33 = arith.cmpi slt, %31, %32 : vector<16x1xi32>
    %cst_18 = arith.constant 0.000000e+00 : f32
    %34 = vector.shape_cast %33 : vector<16x1xi1> to vector<16x1xi1>
    %35 = vector.broadcast %34 : vector<16x1xi1> to vector<16x128xi1>
    %36 = vector.broadcast %cst_18 : f32 to vector<16x128xf32>
    %37 = arith.select %35, %22, %36 : vector<16x128xi1>, vector<16x128xf32>
    %cst_19 = arith.constant 0.000000e+00 : f32
    %38 = vector.shape_cast %33 : vector<16x1xi1> to vector<16x1xi1>
    %39 = vector.broadcast %38 : vector<16x1xi1> to vector<16x128xi1>
    %40 = vector.broadcast %cst_19 : f32 to vector<16x128xf32>
    %41 = arith.select %39, %27, %40 : vector<16x128xi1>, vector<16x128xf32>
    %c0_20 = arith.constant 0 : index
    %c0_21 = arith.constant 0 : index
    %c0_22 = arith.constant 0 : index
    %42 = vector.load %arg6[%c0_20, %c0_21, %c0_22] : memref<2x16x128xf32, #tpu.memory_space<vmem>>, vector<1x16x128xf32>
    %43 = vector.shape_cast %42 : vector<1x16x128xf32> to vector<16x128xf32>
    %44 = vector.shape_cast %37 : vector<16x128xf32> to vector<1x16x128xf32>
    tpu.vector_store %arg6[%c0_20, %c0_21, %c0_22], %44 {strides = array<i32>} : memref<2x16x128xf32, #tpu.memory_space<vmem>>, vector<1x16x128xf32>,
    %c1 = arith.constant 1 : index
    %c0_23 = arith.constant 0 : index
    %c0_24 = arith.constant 0 : index
    %45 = vector.load %arg6[%c1, %c0_23, %c0_24] : memref<2x16x128xf32, #tpu.memory_space<vmem>>, vector<1x16x128xf32>
    %46 = vector.shape_cast %45 : vector<1x16x128xf32> to vector<16x128xf32>
    %47 = vector.shape_cast %41 : vector<16x128xf32> to vector<1x16x128xf32>
    tpu.vector_store %arg6[%c1, %c0_23, %c0_24], %47 {strides = array<i32>} : memref<2x16x128xf32, #tpu.memory_space<vmem>>, vector<1x16x128xf32>,
    %cst_25 = arith.constant dense<0.000000e+00> : vector<128xf32>
    %48 = vector.multi_reduction <add>, %37, %cst_25 [0] : vector<16x128xf32> to vector<128xf32>
    %49 = vector.shape_cast %48 : vector<128xf32> to vector<1x128xf32>
    %c0_26 = arith.constant 0 : index
    %c0_27 = arith.constant 0 : index
    %c0_28 = arith.constant 0 : index
    %50 = vector.load %arg7[%c0_26, %c0_27, %c0_28] : memref<1x1x128xf32, #tpu.memory_space<vmem>>, vector<1x1x128xf32>
    %51 = vector.shape_cast %50 : vector<1x1x128xf32> to vector<1x128xf32>
    %52 = vector.shape_cast %49 : vector<1x128xf32> to vector<1x1x128xf32>
    tpu.vector_store %arg7[%c0_26, %c0_27, %c0_28], %52 {strides = array<i32>} : memref<1x1x128xf32, #tpu.memory_space<vmem>>, vector<1x1x128xf32>,
    return
  }
  func.func @transform_0(%arg0: i32) -> (i32, i32) {
    %c0_i32 = arith.constant 0 : i32
    %c0_i32_0 = arith.constant 0 : i32
    return %arg0, %c0_i32 : i32, i32
  }
  func.func @transform_1(%arg0: i32) -> (i32, i32) {
    %c0_i32 = arith.constant 0 : i32
    %c0_i32_0 = arith.constant 0 : i32
    %c0_i32_1 = arith.constant 0 : i32
    return %c0_i32, %c0_i32_0 : i32, i32
  }
  func.func @transform_2(%arg0: i32) -> (i32, i32) {
    %c0_i32 = arith.constant 0 : i32
    %c0_i32_0 = arith.constant 0 : i32
    %c0_i32_1 = arith.constant 0 : i32
    return %c0_i32, %c0_i32_0 : i32, i32
  }
  func.func @transform_3(%arg0: i32) -> (i32, i32) {
    %c0_i32 = arith.constant 0 : i32
    %c0_i32_0 = arith.constant 0 : i32
    %c0_i32_1 = arith.constant 0 : i32
    return %c0_i32, %c0_i32_0 : i32, i32
  }
  func.func @transform_4(%arg0: i32) -> (i32, i32) {
    %c0_i32 = arith.constant 0 : i32
    %c0_i32_0 = arith.constant 0 : i32
    %c0_i32_1 = arith.constant 0 : i32
    return %c0_i32, %c0_i32_0 : i32, i32
  }
  func.func @transform_5(%arg0: i32) -> (i32, i32, i32) {
    %c0_i32 = arith.constant 0 : i32
    %c0_i32_0 = arith.constant 0 : i32
    %c0_i32_1 = arith.constant 0 : i32
    return %c0_i32, %arg0, %c0_i32_0 : i32, i32, i32
  }
  func.func @transform_6(%arg0: i32) -> (i32, i32, i32) {
    %c0_i32 = arith.constant 0 : i32
    %c0_i32_0 = arith.constant 0 : i32
    %c0_i32_1 = arith.constant 0 : i32
    return %arg0, %c0_i32, %c0_i32_0 : i32, i32, i32
  }
}

</mosaic_0001>

<llo_original>
// kernel: tpu_custom_call.1
$region0: #{tpu_custom_call.1}
  #allocation0 [shape = 'u32[]', space=smem, size = 0x4, offset = 0x4, fixed_abs, tag = 'smem constant byte address 0x4 - core index']
  #allocation1 [shape = 'u32[144,128]{1,0:T(1,128)}', space=vmem, size = 0x12000, scoped, tag = 'internal scratch']
  #allocation2 [shape = 'f32[1,1]{1,0:T(1,128)S(6)}', space=smem, size = 0x200, scoped, tag = 'scoped memory for tpu_custom_call.1']
  %s0 = inlined_call_operand.hbm [shape: bf16[16,16], index: 0, kind: input, shape index: {}]
  %s1 = inlined_call_operand.hbm [shape: bf16[16,256], index: 1, kind: input, shape index: {}]
  %s2 = inlined_call_operand.hbm [shape: bf16[128,128], index: 2, kind: input, shape index: {}]
  %s3 = inlined_call_operand.vmem [shape: f32[1,128], index: 3, kind: input, shape index: {}]
  %s4 = inlined_call_operand.<no memory space> [shape: f32[1,1], index: 4, kind: input, shape index: {}]
  %s5 = inlined_call_operand.hbm [shape: f32[2,16,128], index: 5, kind: output, shape index: {0}]
  %s6 = inlined_call_operand.hbm [shape: f32[1,1,128], index: 6, kind: output, shape index: {1}]
  %7 = xla_tuple %s5, %s6
  %s8 = sld [smem:[#allocation0]]
  $region50: #{tpu_custom_call.1} parent=0
    _
  %s10 = ssub.s32 1, %s8
  %s11 = scalar_select 0, %s10, %s8
  %12 = sst [smem:[#allocation2]] %s4
  $region1: #{tpu_custom_call.1} parent=0
    #allocation3 [shape = 'u8[4096]{0}', space=vmem, size = 0x1000, scoped, tag = 'input window, operand 0, single buffered']
    #allocation4 [shape = 's32[1]{0}', space=sflag, size = 0x4, scoped, tag = 'scoped memory for tpu_custom_call.1']
    #allocation5 [shape = 's32[1]{0}', space=sflag, size = 0x4, scoped, tag = 'scoped memory for tpu_custom_call.1']
    #allocation6 [shape = 'u8[8192]{0}', space=vmem, size = 0x2000, scoped, tag = 'input window, operand 1, single buffered']
    #allocation7 [shape = 's32[1]{0}', space=sflag, size = 0x4, scoped, tag = 'scoped memory for tpu_custom_call.1']
    #allocation8 [shape = 'u8[32768]{0}', space=vmem, size = 0x8000, scoped, tag = 'input window, operand 2, single buffered']
    #allocation9 [shape = 'u8[16384]{0}', space=vmem, size = 0x4000, scoped, tag = 'output window, operand 0, single buffered']
    #allocation10 [shape = 'u8[512]{0}', space=vmem, size = 0x400, scoped, tag = 'output window, operand 1, single buffered']
    #allocation11 [shape = 's32[1]{0}', space=sflag, size = 0x4, scoped, tag = 'scoped memory for tpu_custom_call.1']
    %13 = vsyncpa [#allocation4], 0
    %14 = vsyncpa [#allocation7], 0
    %15 = vsyncpa [#allocation5], 0
    %16 = vsyncpa [#allocation11], 0
    // Predicated region
    $region2: #{tpu_custom_call.1} parent=1 // pred_check
      _
    $region3: #{tpu_custom_call.1} parent=1 // pred_check_branch
      %18 = sbr.rel (0) target = $region5
    $region4: #{tpu_custom_call.1} parent=1 // pred_region
      %s20 = ssub.s32 128, 128
      %21 = vsyncadd [#allocation4], %s20
      %s22 = sshll.u32 [#allocation3], 4
      %s23 = int_to_ptr.vmem [resolvable:$true] %s22
      %28 = dma.hbm_to_vmem [thread:$0]  %s0, 128, %s23, [#allocation4], 64, 64, 4
    $region5: #{tpu_custom_call.1} parent=1 // pred_fallthru
      _
    // Predicated region
    $region6: #{tpu_custom_call.1} parent=1 // pred_check
      _
    $region7: #{tpu_custom_call.1} parent=1 // pred_check_branch
      %30 = sbr.rel (0) target = $region9
    $region8: #{tpu_custom_call.1} parent=1 // pred_region
      %s32 = ssub.s32 256, 256
      %33 = vsyncadd [#allocation7], %s32
      %s34 = sshll.u32 [#allocation6], 4
      %s35 = int_to_ptr.vmem [resolvable:$true] %s34
      %40 = dma.hbm_to_vmem [thread:$0]  %s1, 256, %s35, [#allocation7], 128, 128, 8
    $region9: #{tpu_custom_call.1} parent=1 // pred_fallthru
      _
    // Predicated region
    $region10: #{tpu_custom_call.1} parent=1 // pred_check
      _
    $region11: #{tpu_custom_call.1} parent=1 // pred_check_branch
      %42 = sbr.rel (0) target = $region13
    $region12: #{tpu_custom_call.1} parent=1 // pred_region
      %s44 = ssub.s32 1024, 1024
      %45 = vsyncadd [#allocation7], %s44
      %s46 = sshll.u32 [#allocation8], 4
      %s47 = int_to_ptr.vmem [resolvable:$true] %s46
      %52 = dma.hbm_to_vmem [thread:$0]  %s2, 1024, %s47, [#allocation7], 64, 64, 4
    $region13: #{tpu_custom_call.1} parent=1 // pred_fallthru
      _
    // Predicated region
    $region14: #{tpu_custom_call.1} parent=1 // pred_check
      _
    $region15: #{tpu_custom_call.1} parent=1 // pred_check_branch
      %54 = sbr.rel (0) target = $region17
    $region16: #{tpu_custom_call.1} parent=1 // pred_region
      _
    $region17: #{tpu_custom_call.1} parent=1 // pred_fallthru
      _
    // Predicated region
    $region18: #{tpu_custom_call.1} parent=1 // pred_check
      _
    $region19: #{tpu_custom_call.1} parent=1 // pred_check_branch
      %56 = sbr.rel (0) target = $region21
    $region20: #{tpu_custom_call.1} parent=1 // pred_region
      _
    $region21: #{tpu_custom_call.1} parent=1 // pred_fallthru
      _
    // Predicated region
    $region22: #{tpu_custom_call.1} parent=1 // pred_check
      _
    $region23: #{tpu_custom_call.1} parent=1 // pred_check_branch
      %58 = sbr.rel (0) target = $region25
    $region24: #{tpu_custom_call.1} parent=1 // pred_region
      %59 = dma.done [#allocation4], 128
    $region25: #{tpu_custom_call.1} parent=1 // pred_fallthru
      _
    // Predicated region
    $region26: #{tpu_custom_call.1} parent=1 // pred_check
      _
    $region27: #{tpu_custom_call.1} parent=1 // pred_check_branch
      %61 = sbr.rel (0) target = $region29
    $region28: #{tpu_custom_call.1} parent=1 // pred_region
      %62 = dma.done [#allocation7], 256
    $region29: #{tpu_custom_call.1} parent=1 // pred_fallthru
      _
    // Predicated region
    $region30: #{tpu_custom_call.1} parent=1 // pred_check
      _
    $region31: #{tpu_custom_call.1} parent=1 // pred_check_branch
      %64 = sbr.rel (0) target = $region33
    $region32: #{tpu_custom_call.1} parent=1 // pred_region
      %65 = dma.done [#allocation7], 1024
    $region33: #{tpu_custom_call.1} parent=1 // pred_fallthru
      _
    %v67 = vld [vmem:[#allocation3] sm:$0xf]
    %v68 = vld [vmem:[#allocation3 + $0x4] sm:$0xf]
    %v69 = vld [vmem:[#allocation6] sm:$0xff]
    %v70 = vld [vmem:[#allocation6 + $0x8] sm:$0xff]
    %v73 = vunpack.c.l.b16 %v67
    %v74 = vunpack.c.l.b16 %v68
    %v75 = vpack.c.b16 %v74, %v73
    %v78 = vunpack.c.l.b16 %v69
    %v79 = vunpack.c.h.b16 %v69
    %v80 = vunpack.c.l.b16 %v70
    %v81 = vunpack.c.h.b16 %v70
    %v82 = vpack.c.b16 %v80, %v78
    %v83 = vpack.c.b16 %v81, %v79
    %vm86 = vcmask 130048
    %v88 = vsel %vm86, %v75, 0
    %90 = vmatprep.subr.bf16.mxu0 0
    %91 = vmatpush1.bf16.msra.mxu0 0
    %92 = vmatprep.subr.bf16.mxu0 0
    %93 = vmatpush1.bf16.msra.mxu0 0
    %94 = vmatprep.subr.bf16.mxu0 0
    %95 = vmatpush1.bf16.msra.mxu0 0
    %96 = vmatprep.subr.bf16.mxu0 0
    %97 = vmatpush1.bf16.msra.mxu0 0
    %98 = vmatprep.subr.bf16.mxu0 0
    %99 = vmatpush1.bf16.msra.mxu0 0
    %100 = vmatprep.subr.bf16.mxu0 0
    %101 = vmatpush1.bf16.msra.mxu0 0
    %102 = vmatprep.subr.bf16.mxu0 0
    %103 = vmatpush1.bf16.msra.mxu0 0
    %104 = vmatprep.subr.bf16.mxu0 %v83
    %105 = vmatpush1.bf16.msra.mxu0 %v82
    %106 = vmatprep.subr.bf16.mxu0 0
    %107 = vmatpush2.bf16.msra.mxu0 0
    %108 = vmatprep.subr.bf16.mxu0 0
    %109 = vmatpush2.bf16.msra.mxu0 0
    %110 = vmatprep.subr.bf16.mxu0 0
    %111 = vmatpush2.bf16.msra.mxu0 0
    %112 = vmatprep.subr.bf16.mxu0 0
    %113 = vmatpush2.bf16.msra.mxu0 0
    %114 = vmatprep.subr.bf16.mxu0 0
    %115 = vmatpush2.bf16.msra.mxu0 0
    %116 = vmatprep.subr.bf16.mxu0 0
    %117 = vmatpush2.bf16.msra.mxu0 0
    %118 = vmatprep.subr.bf16.mxu0 0
    %119 = vmatpush2.bf16.msra.mxu0 0
    %120 = vmatprep.subr.bf16.mxu0 0
    %121 = vmatpush2.bf16.msra.mxu0 0
    %122 = vmatprep.mubr.bf16.mxu0 0
    %123 = vmatmul.mubr.bf16.gmra.mxu0 %v88
    %v124 = vpop.f32.mrf.mxu0
    %v125 = vadd.f32 0.0, %v124
    %v126 = vpop.f32.mrf.mxu0
    %v127 = vadd.f32 0.0, %v126
    %v128 = vpop.f32.mrf.mxu0
    %v129 = vadd.f32 0.0, %v128
    %v130 = vpop.f32.mrf.mxu0
    %v131 = vadd.f32 0.0, %v130
    %132 = vdwg.mxu0
    %v133 = vpack.c.bf16 %v129, %v125
    %v134 = vpack.c.bf16 %v131, %v127
    %v135 = vld [vmem:[#allocation8] sm:$0xf]
    %v136 = vld [vmem:[#allocation8 + $0x4] sm:$0xf]
    %v137 = vld [vmem:[#allocation8 + $0x8] sm:$0xf]
    %v138 = vld [vmem:[#allocation8 + $0xc] sm:$0xf]
    %v139 = vld [vmem:[#allocation8 + $0x10] sm:$0xf]
    %v140 = vld [vmem:[#allocation8 + $0x14] sm:$0xf]
    %v141 = vld [vmem:[#allocation8 + $0x18] sm:$0xf]
    %v142 = vld [vmem:[#allocation8 + $0x1c] sm:$0xf]
    %v143 = vld [vmem:[#allocation8 + $0x20] sm:$0xf]
    %v144 = vld [vmem:[#allocation8 + $0x24] sm:$0xf]
    %v145 = vld [vmem:[#allocation8 + $0x28] sm:$0xf]
    %v146 = vld [vmem:[#allocation8 + $0x2c] sm:$0xf]
    %v147 = vld [vmem:[#allocation8 + $0x30] sm:$0xf]
    %v148 = vld [vmem:[#allocation8 + $0x34] sm:$0xf]
    %v149 = vld [vmem:[#allocation8 + $0x38] sm:$0xf]
    %v150 = vld [vmem:[#allocation8 + $0x3c] sm:$0xf]
    %v151 = vld [vmem:[%s3] sm:$0x1]
    %v153 = vlaneseq
    %v154 = vshrl.u32 %v153, 7
    %v155 = vsub.s32 0, %v154
    %v156 = vrot.slane %v151, %v155
    %v174 = vunpack.c.l.b16 %v135
    %v175 = vunpack.c.l.b16 %v136
    %v176 = vunpack.c.l.b16 %v137
    %v177 = vunpack.c.l.b16 %v138
    %v178 = vunpack.c.l.b16 %v139
    %v179 = vunpack.c.l.b16 %v140
    %v180 = vunpack.c.l.b16 %v141
    %v181 = vunpack.c.l.b16 %v142
    %v182 = vunpack.c.l.b16 %v143
    %v183 = vunpack.c.l.b16 %v144
    %v184 = vunpack.c.l.b16 %v145
    %v185 = vunpack.c.l.b16 %v146
    %v186 = vunpack.c.l.b16 %v147
    %v187 = vunpack.c.l.b16 %v148
    %v188 = vunpack.c.l.b16 %v149
    %v189 = vunpack.c.l.b16 %v150
    %v190 = vpack.c.b16 %v175, %v174
    %v191 = vpack.c.b16 %v177, %v176
    %v192 = vpack.c.b16 %v179, %v178
    %v193 = vpack.c.b16 %v181, %v180
    %v194 = vpack.c.b16 %v183, %v182
    %v195 = vpack.c.b16 %v185, %v184
    %v196 = vpack.c.b16 %v187, %v186
    %v197 = vpack.c.b16 %v189, %v188
    %206 = vmatprep.subr.bf16.mxu0 0
    %207 = vmatpush1.bf16.msra.mxu0 %v197
    %208 = vmatprep.subr.bf16.mxu0 0
    %209 = vmatpush1.bf16.msra.mxu0 %v196
    %210 = vmatprep.subr.bf16.mxu0 0
    %211 = vmatpush1.bf16.msra.mxu0 %v195
    %212 = vmatprep.subr.bf16.mxu0 0
    %213 = vmatpush1.bf16.msra.mxu0 %v194
    %214 = vmatprep.subr.bf16.mxu0 0
    %215 = vmatpush1.bf16.msra.mxu0 %v193
    %216 = vmatprep.subr.bf16.mxu0 0
    %217 = vmatpush1.bf16.msra.mxu0 %v192
    %218 = vmatprep.subr.bf16.mxu0 0
    %219 = vmatpush1.bf16.msra.mxu0 %v191
    %220 = vmatprep.subr.bf16.mxu0 0
    %221 = vmatpush1.bf16.msra.mxu0 %v190
    %222 = vmatprep.subr.bf16.mxu0 0
    %223 = vmatpush2.bf16.msra.mxu0 0
    %224 = vmatprep.subr.bf16.mxu0 0
    %225 = vmatpush2.bf16.msra.mxu0 0
    %226 = vmatprep.subr.bf16.mxu0 0
    %227 = vmatpush2.bf16.msra.mxu0 0
    %228 = vmatprep.subr.bf16.mxu0 0
    %229 = vmatpush2.bf16.msra.mxu0 0
    %230 = vmatprep.subr.bf16.mxu0 0
    %231 = vmatpush2.bf16.msra.mxu0 0
    %232 = vmatprep.subr.bf16.mxu0 0
    %233 = vmatpush2.bf16.msra.mxu0 0
    %234 = vmatprep.subr.bf16.mxu0 0
    %235 = vmatpush2.bf16.msra.mxu0 0
    %236 = vmatprep.subr.bf16.mxu0 0
    %237 = vmatpush2.bf16.msra.mxu0 0
    %238 = vmatprep.mubr.bf16.mxu0 0
    %239 = vmatmul.mubr.bf16.gmra.mxu0 %v133
    %v240 = vpop.f32.mrf.mxu0
    %v241 = vadd.f32 %v156, %v240
    %v242 = vpop.f32.mrf.mxu0
    %v243 = vpop.f32.mrf.mxu0
    %v244 = vadd.f32 %v156, %v243
    %v245 = vpop.f32.mrf.mxu0
    %246 = vdwg.mxu0
    %247 = vmatprep.subr.bf16.mxu0 0
    %248 = vmatpush1.bf16.msra.mxu0 %v197
    %249 = vmatprep.subr.bf16.mxu0 0
    %250 = vmatpush1.bf16.msra.mxu0 %v196
    %251 = vmatprep.subr.bf16.mxu0 0
    %252 = vmatpush1.bf16.msra.mxu0 %v195
    %253 = vmatprep.subr.bf16.mxu0 0
    %254 = vmatpush1.bf16.msra.mxu0 %v194
    %255 = vmatprep.subr.bf16.mxu0 0
    %256 = vmatpush1.bf16.msra.mxu0 %v193
    %257 = vmatprep.subr.bf16.mxu0 0
    %258 = vmatpush1.bf16.msra.mxu0 %v192
    %259 = vmatprep.subr.bf16.mxu0 0
    %260 = vmatpush1.bf16.msra.mxu0 %v191
    %261 = vmatprep.subr.bf16.mxu0 0
    %262 = vmatpush1.bf16.msra.mxu0 %v190
    %263 = vmatprep.subr.bf16.mxu0 0
    %264 = vmatpush2.bf16.msra.mxu0 0
    %265 = vmatprep.subr.bf16.mxu0 0
    %266 = vmatpush2.bf16.msra.mxu0 0
    %267 = vmatprep.subr.bf16.mxu0 0
    %268 = vmatpush2.bf16.msra.mxu0 0
    %269 = vmatprep.subr.bf16.mxu0 0
    %270 = vmatpush2.bf16.msra.mxu0 0
    %271 = vmatprep.subr.bf16.mxu0 0
    %272 = vmatpush2.bf16.msra.mxu0 0
    %273 = vmatprep.subr.bf16.mxu0 0
    %274 = vmatpush2.bf16.msra.mxu0 0
    %275 = vmatprep.subr.bf16.mxu0 0
    %276 = vmatpush2.bf16.msra.mxu0 0
    %277 = vmatprep.subr.bf16.mxu0 0
    %278 = vmatpush2.bf16.msra.mxu0 0
    %279 = vmatprep.mubr.bf16.mxu0 0
    %280 = vmatmul.mubr.bf16.gmra.mxu0 %v134
    %v281 = vpop.f32.mrf.mxu0
    %v282 = vadd.f32 %v156, %v281
    %v283 = vpop.f32.mrf.mxu0
    %v284 = vpop.f32.mrf.mxu0
    %v285 = vadd.f32 %v156, %v284
    %v286 = vpop.f32.mrf.mxu0
    %287 = vdwg.mxu0
    %s288 = sld [smem:[#allocation2]]
    %vm289 = vcmp.gt.f32.partialorder %v241, 0.0
    %vm290 = vcmp.gt.f32.partialorder %v244, 0.0
    %v291 = vstv %s288
    %v292 = vmul.f32 %v291, %v241
    %v293 = vmul.f32 %v291, %v244
    %v294 = vsel %vm289, %v241, %v292
    %v295 = vsel %vm290, %v244, %v293
    %vm296 = vcmp.gt.f32.partialorder %v282, 0.0
    %vm297 = vcmp.gt.f32.partialorder %v285, 0.0
    %v298 = vmul.f32 %v291, %v282
    %v299 = vmul.f32 %v291, %v285
    %v300 = vsel %vm296, %v282, %v298
    %v301 = vsel %vm297, %v285, %v299
    %s302 = smul.u32 0, 16
    %v303 = vlaneseq
    %v304 = vshrl.u32 %v303, 7
    %v305 = vadd.s32 %v304, 8
    %v306 = vstv %s302
    %v307 = vadd.s32 %v304, %v306
    %v308 = vadd.s32 %v305, %v306
    %vm309 = vcmp.lt.s32.totalorder %v307, 16
    %vm310 = vcmp.lt.s32.totalorder %v308, 16
    %v311 = vsel %vm309, 1, 0
    %v312 = vsel %vm310, 1, 0
    %vm313 = vcmp.eq.s32.totalorder %v311, 1
    %vm314 = vcmp.eq.s32.totalorder %v312, 1
    %v315 = vsel %vm313, %v294, 0.0
    %v316 = vsel %vm314, %v295, 0.0
    %v317 = vsel %vm313, %v300, 0.0
    %v318 = vsel %vm314, %v301, 0.0
    %319 = vst [vmem:[#allocation9] sm:$0xff] %v315
    %320 = vst [vmem:[#allocation9 + $0x8] sm:$0xff] %v316
    %s321 = scalar_lea.vmem [#allocation9], 16
    %322 = vst [vmem:[%s321] sm:$0xff] %v317
    %323 = vst [vmem:[%s321 + $0x8] sm:$0xff] %v318
    %v324 = vadd.f32 %v315, %v316
    %v325 = vrot.slane %v324, 4
    %v326 = vadd.f32 %v324, %v325
    %v327 = vrot.slane %v326, 2
    %v328 = vadd.f32 %v326, %v327
    %v329 = vrot.slane %v328, 1
    %v330 = vadd.f32 %v328, %v329
    %331 = vst [vmem:[#allocation10] sm:$0x1] %v330
    // Predicated region
    $region34: #{tpu_custom_call.1} parent=1 // pred_check
      _
    $region35: #{tpu_custom_call.1} parent=1 // pred_check_branch
      %333 = sbr.rel (0) target = $region37
    $region36: #{tpu_custom_call.1} parent=1 // pred_region
      %s335 = ssub.s32 512, 512
      %336 = vsyncadd [#allocation5], %s335
      %s337 = sshll.u32 [#allocation9], 4
      %s338 = int_to_ptr.vmem [resolvable:$true] %s337
      %343 = dma.vmem_to_hbm [thread:$0]  %s338, 512, %s5, [#allocation5], 128, 128, 8
    $region37: #{tpu_custom_call.1} parent=1 // pred_fallthru
      _
    // Predicated region
    $region38: #{tpu_custom_call.1} parent=1 // pred_check
      _
    $region39: #{tpu_custom_call.1} parent=1 // pred_check_branch
      %345 = sbr.rel (0) target = $region41
    $region40: #{tpu_custom_call.1} parent=1 // pred_region
      %s347 = ssub.s32 16, 16
      %348 = vsyncadd [#allocation11], %s347
      %s350 = sshll.u32 [#allocation10], 4
      %s351 = int_to_ptr.vmem [resolvable:$true] %s350
      %353 = dma.vmem_to_hbm [thread:$0]  %s351, 16, %s6, [#allocation11]
    $region41: #{tpu_custom_call.1} parent=1 // pred_fallthru
      _
    // Predicated region
    $region42: #{tpu_custom_call.1} parent=1 // pred_check
      _
    $region43: #{tpu_custom_call.1} parent=1 // pred_check_branch
      %355 = sbr.rel (0) target = $region45
    $region44: #{tpu_custom_call.1} parent=1 // pred_region
      %356 = dma.done [#allocation5], 512
    $region45: #{tpu_custom_call.1} parent=1 // pred_fallthru
      _
    // Predicated region
    $region46: #{tpu_custom_call.1} parent=1 // pred_check
      _
    $region47: #{tpu_custom_call.1} parent=1 // pred_check_branch
      %358 = sbr.rel (0) target = $region49
    $region48: #{tpu_custom_call.1} parent=1 // pred_region
      %359 = dma.done [#allocation11], 16
    $region49: #{tpu_custom_call.1} parent=1 // pred_fallthru
      _
    %360 = vsyncpa [#allocation4], 1
    %361 = vsyncpa [#allocation7], 1
    %362 = vsyncpa [#allocation5], 1
    %363 = vsyncpa [#allocation11], 1

// kernel: tpu_custom_call.1
$region0: #{tpu_custom_call.1}
  #allocation0 [shape = 'u32[]', space=smem, size = 0x4, offset = 0x4, fixed_abs, tag = 'smem constant byte address 0x4 - core index']
  #allocation1 [shape = 'u32[144,128]{1,0:T(1,128)}', space=vmem, size = 0x12000, scoped, tag = 'internal scratch']
  #allocation2 [shape = 'f32[1,1]{1,0:T(1,128)S(6)}', space=smem, size = 0x200, scoped, tag = 'scoped memory for tpu_custom_call.1']
  %s0 = inlined_call_operand.hbm [shape: bf16[16,16], index: 0, kind: input, shape index: {}]
  %s1 = inlined_call_operand.hbm [shape: bf16[16,256], index: 1, kind: input, shape index: {}]
  %s2 = inlined_call_operand.hbm [shape: bf16[128,128], index: 2, kind: input, shape index: {}]
  %s3 = inlined_call_operand.vmem [shape: f32[1,128], index: 3, kind: input, shape index: {}]
  %s4 = inlined_call_operand.<no memory space> [shape: f32[1,1], index: 4, kind: input, shape index: {}]
  %s5 = inlined_call_operand.hbm [shape: f32[2,16,128], index: 5, kind: output, shape index: {0}]
  %s6 = inlined_call_operand.hbm [shape: f32[1,1,128], index: 6, kind: output, shape index: {1}]
  %7 = xla_tuple %s5, %s6
  %s8 = sld [smem:[#allocation0]]
  $region50: #{tpu_custom_call.1} parent=0
    _
  %s10 = ssub.s32 1, %s8
  %s11 = scalar_select 0, %s10, %s8
  %12 = sst [smem:[#allocation2]] %s4
  $region1: #{tpu_custom_call.1} parent=0
    #allocation3 [shape = 'u8[4096]{0}', space=vmem, size = 0x1000, scoped, tag = 'input window, operand 0, single buffered']
    #allocation4 [shape = 's32[1]{0}', space=sflag, size = 0x4, scoped, tag = 'scoped memory for tpu_custom_call.1']
    #allocation5 [shape = 's32[1]{0}', space=sflag, size = 0x4, scoped, tag = 'scoped memory for tpu_custom_call.1']
    #allocation6 [shape = 'u8[8192]{0}', space=vmem, size = 0x2000, scoped, tag = 'input window, operand 1, single buffered']
    #allocation7 [shape = 's32[1]{0}', space=sflag, size = 0x4, scoped, tag = 'scoped memory for tpu_custom_call.1']
    #allocation8 [shape = 'u8[32768]{0}', space=vmem, size = 0x8000, scoped, tag = 'input window, operand 2, single buffered']
    #allocation9 [shape = 'u8[16384]{0}', space=vmem, size = 0x4000, scoped, tag = 'output window, operand 0, single buffered']
    #allocation10 [shape = 'u8[512]{0}', space=vmem, size = 0x400, scoped, tag = 'output window, operand 1, single buffered']
    #allocation11 [shape = 's32[1]{0}', space=sflag, size = 0x4, scoped, tag = 'scoped memory for tpu_custom_call.1']
    %13 = vsyncpa [#allocation4], 0
    %14 = vsyncpa [#allocation7], 0
    %15 = vsyncpa [#allocation5], 0
    %16 = vsyncpa [#allocation11], 0
    // Predicated region
    $region2: #{tpu_custom_call.1} parent=1 // pred_check
      _
    $region3: #{tpu_custom_call.1} parent=1 // pred_check_branch
      %18 = sbr.rel (0) target = $region5
    $region4: #{tpu_custom_call.1} parent=1 // pred_region
      %s20 = ssub.s32 128, 128
      %21 = vsyncadd [#allocation4], %s20
      %s22 = sshll.u32 [#allocation3], 4
      %s23 = int_to_ptr.vmem [resolvable:$true] %s22
      %28 = dma.hbm_to_vmem [thread:$0]  %s0, 128, %s23, [#allocation4], 64, 64, 4
    $region5: #{tpu_custom_call.1} parent=1 // pred_fallthru
      _
    // Predicated region
    $region6: #{tpu_custom_call.1} parent=1 // pred_check
      _
    $region7: #{tpu_custom_call.1} parent=1 // pred_check_branch
      %30 = sbr.rel (0) target = $region9
    $region8: #{tpu_custom_call.1} parent=1 // pred_region
      %s32 = ssub.s32 256, 256
      %33 = vsyncadd [#allocation7], %s32
      %s34 = sshll.u32 [#allocation6], 4
      %s35 = int_to_ptr.vmem [resolvable:$true] %s34
      %40 = dma.hbm_to_vmem [thread:$0]  %s1, 256, %s35, [#allocation7], 128, 128, 8
    $region9: #{tpu_custom_call.1} parent=1 // pred_fallthru
      _
    // Predicated region
    $region10: #{tpu_custom_call.1} parent=1 // pred_check
      _
    $region11: #{tpu_custom_call.1} parent=1 // pred_check_branch
      %42 = sbr.rel (0) target = $region13
    $region12: #{tpu_custom_call.1} parent=1 // pred_region
      %s44 = ssub.s32 1024, 1024
      %45 = vsyncadd [#allocation7], %s44
      %s46 = sshll.u32 [#allocation8], 4
      %s47 = int_to_ptr.vmem [resolvable:$true] %s46
      %52 = dma.hbm_to_vmem [thread:$0]  %s2, 1024, %s47, [#allocation7], 64, 64, 4
    $region13: #{tpu_custom_call.1} parent=1 // pred_fallthru
      _
    // Predicated region
    $region14: #{tpu_custom_call.1} parent=1 // pred_check
      _
    $region15: #{tpu_custom_call.1} parent=1 // pred_check_branch
      %54 = sbr.rel (0) target = $region17
    $region16: #{tpu_custom_call.1} parent=1 // pred_region
      _
    $region17: #{tpu_custom_call.1} parent=1 // pred_fallthru
      _
    // Predicated region
    $region18: #{tpu_custom_call.1} parent=1 // pred_check
      _
    $region19: #{tpu_custom_call.1} parent=1 // pred_check_branch
      %56 = sbr.rel (0) target = $region21
    $region20: #{tpu_custom_call.1} parent=1 // pred_region
      _
    $region21: #{tpu_custom_call.1} parent=1 // pred_fallthru
      _
    // Predicated region
    $region22: #{tpu_custom_call.1} parent=1 // pred_check
      _
    $region23: #{tpu_custom_call.1} parent=1 // pred_check_branch
      %58 = sbr.rel (0) target = $region25
    $region24: #{tpu_custom_call.1} parent=1 // pred_region
      %59 = dma.done [#allocation4], 128
    $region25: #{tpu_custom_call.1} parent=1 // pred_fallthru
      _
    // Predicated region
    $region26: #{tpu_custom_call.1} parent=1 // pred_check
      _
    $region27: #{tpu_custom_call.1} parent=1 // pred_check_branch
      %61 = sbr.rel (0) target = $region29
    $region28: #{tpu_custom_call.1} parent=1 // pred_region
      %62 = dma.done [#allocation7], 256
    $region29: #{tpu_custom_call.1} parent=1 // pred_fallthru
      _
    // Predicated region
    $region30: #{tpu_custom_call.1} parent=1 // pred_check
      _
    $region31: #{tpu_custom_call.1} parent=1 // pred_check_branch
      %64 = sbr.rel (0) target = $region33
    $region32: #{tpu_custom_call.1} parent=1 // pred_region
      %65 = dma.done [#allocation7], 1024
    $region33: #{tpu_custom_call.1} parent=1 // pred_fallthru
      _
    %v67 = vld [vmem:[#allocation3] sm:$0xf]
    %v68 = vld [vmem:[#allocation3 + $0x4] sm:$0xf]
    %v69 = vld [vmem:[#allocation6] sm:$0xff]
    %v70 = vld [vmem:[#allocation6 + $0x8] sm:$0xff]
    %v73 = vunpack.c.l.b16 %v67
    %v74 = vunpack.c.l.b16 %v68
    %v75 = vpack.c.b16 %v74, %v73
    %v78 = vunpack.c.l.b16 %v69
    %v79 = vunpack.c.h.b16 %v69
    %v80 = vunpack.c.l.b16 %v70
    %v81 = vunpack.c.h.b16 %v70
    %v82 = vpack.c.b16 %v80, %v78
    %v83 = vpack.c.b16 %v81, %v79
    %vm86 = vcmask 130048
    %v88 = vsel %vm86, %v75, 0
    %90 = vmatprep.subr.bf16.mxu0 0
    %91 = vmatpush1.bf16.msra.mxu0 0
    %92 = vmatprep.subr.bf16.mxu0 0
    %93 = vmatpush1.bf16.msra.mxu0 0
    %94 = vmatprep.subr.bf16.mxu0 0
    %95 = vmatpush1.bf16.msra.mxu0 0
    %96 = vmatprep.subr.bf16.mxu0 0
    %97 = vmatpush1.bf16.msra.mxu0 0
    %98 = vmatprep.subr.bf16.mxu0 0
    %99 = vmatpush1.bf16.msra.mxu0 0
    %100 = vmatprep.subr.bf16.mxu0 0
    %101 = vmatpush1.bf16.msra.mxu0 0
    %102 = vmatprep.subr.bf16.mxu0 0
    %103 = vmatpush1.bf16.msra.mxu0 0
    %104 = vmatprep.subr.bf16.mxu0 %v83
    %105 = vmatpush1.bf16.msra.mxu0 %v82
    %106 = vmatprep.subr.bf16.mxu0 0
    %107 = vmatpush2.bf16.msra.mxu0 0
    %108 = vmatprep.subr.bf16.mxu0 0
    %109 = vmatpush2.bf16.msra.mxu0 0
    %110 = vmatprep.subr.bf16.mxu0 0
    %111 = vmatpush2.bf16.msra.mxu0 0
    %112 = vmatprep.subr.bf16.mxu0 0
    %113 = vmatpush2.bf16.msra.mxu0 0
    %114 = vmatprep.subr.bf16.mxu0 0
    %115 = vmatpush2.bf16.msra.mxu0 0
    %116 = vmatprep.subr.bf16.mxu0 0
    %117 = vmatpush2.bf16.msra.mxu0 0
    %118 = vmatprep.subr.bf16.mxu0 0
    %119 = vmatpush2.bf16.msra.mxu0 0
    %120 = vmatprep.subr.bf16.mxu0 0
    %121 = vmatpush2.bf16.msra.mxu0 0
    %122 = vmatprep.mubr.bf16.mxu0 0
    %123 = vmatmul.mubr.bf16.gmra.mxu0 %v88
    %v124 = vpop.f32.mrf.mxu0
    %v125 = vadd.f32 0.0, %v124
    %v126 = vpop.f32.mrf.mxu0
    %v127 = vadd.f32 0.0, %v126
    %v128 = vpop.f32.mrf.mxu0
    %v129 = vadd.f32 0.0, %v128
    %v130 = vpop.f32.mrf.mxu0
    %v131 = vadd.f32 0.0, %v130
    %132 = vdwg.mxu0
    %v133 = vpack.c.bf16 %v129, %v125
    %v134 = vpack.c.bf16 %v131, %v127
    %v135 = vld [vmem:[#allocation8] sm:$0xf]
    %v136 = vld [vmem:[#allocation8 + $0x4] sm:$0xf]
    %v137 = vld [vmem:[#allocation8 + $0x8] sm:$0xf]
    %v138 = vld [vmem:[#allocation8 + $0xc] sm:$0xf]
    %v139 = vld [vmem:[#allocation8 + $0x10] sm:$0xf]
    %v140 = vld [vmem:[#allocation8 + $0x14] sm:$0xf]
    %v141 = vld [vmem:[#allocation8 + $0x18] sm:$0xf]
    %v142 = vld [vmem:[#allocation8 + $0x1c] sm:$0xf]
    %v143 = vld [vmem:[#allocation8 + $0x20] sm:$0xf]
    %v144 = vld [vmem:[#allocation8 + $0x24] sm:$0xf]
    %v145 = vld [vmem:[#allocation8 + $0x28] sm:$0xf]
    %v146 = vld [vmem:[#allocation8 + $0x2c] sm:$0xf]
    %v147 = vld [vmem:[#allocation8 + $0x30] sm:$0xf]
    %v148 = vld [vmem:[#allocation8 + $0x34] sm:$0xf]
    %v149 = vld [vmem:[#allocation8 + $0x38] sm:$0xf]
    %v150 = vld [vmem:[#allocation8 + $0x3c] sm:$0xf]
    %v151 = vld [vmem:[%s3] sm:$0x1]
    %v153 = vlaneseq
    %v154 = vshrl.u32 %v153, 7
    %v155 = vsub.s32 0, %v154
    %v156 = vrot.slane %v151, %v155
    %v174 = vunpack.c.l.b16 %v135
    %v175 = vunpack.c.l.b16 %v136
    %v176 = vunpack.c.l.b16 %v137
    %v177 = vunpack.c.l.b16 %v138
    %v178 = vunpack.c.l.b16 %v139
    %v179 = vunpack.c.l.b16 %v140
    %v180 = vunpack.c.l.b16 %v141
    %v181 = vunpack.c.l.b16 %v142
    %v182 = vunpack.c.l.b16 %v143
    %v183 = vunpack.c.l.b16 %v144
    %v184 = vunpack.c.l.b16 %v145
    %v185 = vunpack.c.l.b16 %v146
    %v186 = vunpack.c.l.b16 %v147
    %v187 = vunpack.c.l.b16 %v148
    %v188 = vunpack.c.l.b16 %v149
    %v189 = vunpack.c.l.b16 %v150
    %v190 = vpack.c.b16 %v175, %v174
    %v191 = vpack.c.b16 %v177, %v176
    %v192 = vpack.c.b16 %v179, %v178
    %v193 = vpack.c.b16 %v181, %v180
    %v194 = vpack.c.b16 %v183, %v182
    %v195 = vpack.c.b16 %v185, %v184
    %v196 = vpack.c.b16 %v187, %v186
    %v197 = vpack.c.b16 %v189, %v188
    %206 = vmatprep.subr.bf16.mxu0 0
    %207 = vmatpush1.bf16.msra.mxu0 %v197
    %208 = vmatprep.subr.bf16.mxu0 0
    %209 = vmatpush1.bf16.msra.mxu0 %v196
    %210 = vmatprep.subr.bf16.mxu0 0
    %211 = vmatpush1.bf16.msra.mxu0 %v195
    %212 = vmatprep.subr.bf16.mxu0 0
    %213 = vmatpush1.bf16.msra.mxu0 %v194
    %214 = vmatprep.subr.bf16.mxu0 0
    %215 = vmatpush1.bf16.msra.mxu0 %v193
    %216 = vmatprep.subr.bf16.mxu0 0
    %217 = vmatpush1.bf16.msra.mxu0 %v192
    %218 = vmatprep.subr.bf16.mxu0 0
    %219 = vmatpush1.bf16.msra.mxu0 %v191
    %220 = vmatprep.subr.bf16.mxu0 0
    %221 = vmatpush1.bf16.msra.mxu0 %v190
    %222 = vmatprep.subr.bf16.mxu0 0
    %223 = vmatpush2.bf16.msra.mxu0 0
    %224 = vmatprep.subr.bf16.mxu0 0
    %225 = vmatpush2.bf16.msra.mxu0 0
    %226 = vmatprep.subr.bf16.mxu0 0
    %227 = vmatpush2.bf16.msra.mxu0 0
    %228 = vmatprep.subr.bf16.mxu0 0
    %229 = vmatpush2.bf16.msra.mxu0 0
    %230 = vmatprep.subr.bf16.mxu0 0
    %231 = vmatpush2.bf16.msra.mxu0 0
    %232 = vmatprep.subr.bf16.mxu0 0
    %233 = vmatpush2.bf16.msra.mxu0 0
    %234 = vmatprep.subr.bf16.mxu0 0
    %235 = vmatpush2.bf16.msra.mxu0 0
    %236 = vmatprep.subr.bf16.mxu0 0
    %237 = vmatpush2.bf16.msra.mxu0 0
    %238 = vmatprep.mubr.bf16.mxu0 0
    %239 = vmatmul.mubr.bf16.gmra.mxu0 %v133
    %v240 = vpop.f32.mrf.mxu0
    %v241 = vadd.f32 %v156, %v240
    %v242 = vpop.f32.mrf.mxu0
    %v243 = vpop.f32.mrf.mxu0
    %v244 = vadd.f32 %v156, %v243
    %v245 = vpop.f32.mrf.mxu0
    %246 = vdwg.mxu0
    %247 = vmatprep.subr.bf16.mxu0 0
    %248 = vmatpush1.bf16.msra.mxu0 %v197
    %249 = vmatprep.subr.bf16.mxu0 0
    %250 = vmatpush1.bf16.msra.mxu0 %v196
    %251 = vmatprep.subr.bf16.mxu0 0
    %252 = vmatpush1.bf16.msra.mxu0 %v195
    %253 = vmatprep.subr.bf16.mxu0 0
    %254 = vmatpush1.bf16.msra.mxu0 %v194
    %255 = vmatprep.subr.bf16.mxu0 0
    %256 = vmatpush1.bf16.msra.mxu0 %v193
    %257 = vmatprep.subr.bf16.mxu0 0
    %258 = vmatpush1.bf16.msra.mxu0 %v192
    %259 = vmatprep.subr.bf16.mxu0 0
    %260 = vmatpush1.bf16.msra.mxu0 %v191
    %261 = vmatprep.subr.bf16.mxu0 0
    %262 = vmatpush1.bf16.msra.mxu0 %v190
    %263 = vmatprep.subr.bf16.mxu0 0
    %264 = vmatpush2.bf16.msra.mxu0 0
    %265 = vmatprep.subr.bf16.mxu0 0
    %266 = vmatpush2.bf16.msra.mxu0 0
    %267 = vmatprep.subr.bf16.mxu0 0
    %268 = vmatpush2.bf16.msra.mxu0 0
    %269 = vmatprep.subr.bf16.mxu0 0
    %270 = vmatpush2.bf16.msra.mxu0 0
    %271 = vmatprep.subr.bf16.mxu0 0
    %272 = vmatpush2.bf16.msra.mxu0 0
    %273 = vmatprep.subr.bf16.mxu0 0
    %274 = vmatpush2.bf16.msra.mxu0 0
    %275 = vmatprep.subr.bf16.mxu0 0
    %276 = vmatpush2.bf16.msra.mxu0 0
    %277 = vmatprep.subr.bf16.mxu0 0
    %278 = vmatpush2.bf16.msra.mxu0 0
    %279 = vmatprep.mubr.bf16.mxu0 0
    %280 = vmatmul.mubr.bf16.gmra.mxu0 %v134
    %v281 = vpop.f32.mrf.mxu0
    %v282 = vadd.f32 %v156, %v281
    %v283 = vpop.f32.mrf.mxu0
    %v284 = vpop.f32.mrf.mxu0
    %v285 = vadd.f32 %v156, %v284
    %v286 = vpop.f32.mrf.mxu0
    %287 = vdwg.mxu0
    %s288 = sld [smem:[#allocation2]]
    %vm289 = vcmp.gt.f32.partialorder %v241, 0.0
    %vm290 = vcmp.gt.f32.partialorder %v244, 0.0
    %v291 = vstv %s288
    %v292 = vmul.f32 %v291, %v241
    %v293 = vmul.f32 %v291, %v244
    %v294 = vsel %vm289, %v241, %v292
    %v295 = vsel %vm290, %v244, %v293
    %vm296 = vcmp.gt.f32.partialorder %v282, 0.0
    %vm297 = vcmp.gt.f32.partialorder %v285, 0.0
    %v298 = vmul.f32 %v291, %v282
    %v299 = vmul.f32 %v291, %v285
    %v300 = vsel %vm296, %v282, %v298
    %v301 = vsel %vm297, %v285, %v299
    %s302 = smul.u32 0, 16
    %v303 = vlaneseq
    %v304 = vshrl.u32 %v303, 7
    %v305 = vadd.s32 %v304, 8
    %v306 = vstv %s302
    %v307 = vadd.s32 %v304, %v306
    %v308 = vadd.s32 %v305, %v306
    %vm309 = vcmp.lt.s32.totalorder %v307, 16
    %vm310 = vcmp.lt.s32.totalorder %v308, 16
    %v311 = vsel %vm309, 1, 0
    %v312 = vsel %vm310, 1, 0
    %vm313 = vcmp.eq.s32.totalorder %v311, 1
    %vm314 = vcmp.eq.s32.totalorder %v312, 1
    %v315 = vsel %vm313, %v294, 0.0
    %v316 = vsel %vm314, %v295, 0.0
    %v317 = vsel %vm313, %v300, 0.0
    %v318 = vsel %vm314, %v301, 0.0
    %319 = vst [vmem:[#allocation9] sm:$0xff] %v315
    %320 = vst [vmem:[#allocation9 + $0x8] sm:$0xff] %v316
    %s321 = scalar_lea.vmem [#allocation9], 16
    %322 = vst [vmem:[%s321] sm:$0xff] %v317
    %323 = vst [vmem:[%s321 + $0x8] sm:$0xff] %v318
    %v324 = vadd.f32 %v315, %v316
    %v325 = vrot.slane %v324, 4
    %v326 = vadd.f32 %v324, %v325
    %v327 = vrot.slane %v326, 2
    %v328 = vadd.f32 %v326, %v327
    %v329 = vrot.slane %v328, 1
    %v330 = vadd.f32 %v328, %v329
    %331 = vst [vmem:[#allocation10] sm:$0x1] %v330
    // Predicated region
    $region34: #{tpu_custom_call.1} parent=1 // pred_check
      _
    $region35: #{tpu_custom_call.1} parent=1 // pred_check_branch
      %333 = sbr.rel (0) target = $region37
    $region36: #{tpu_custom_call.1} parent=1 // pred_region
      %s335 = ssub.s32 512, 512
      %336 = vsyncadd [#allocation5], %s335
      %s337 = sshll.u32 [#allocation9], 4
      %s338 = int_to_ptr.vmem [resolvable:$true] %s337
      %343 = dma.vmem_to_hbm [thread:$0]  %s338, 512, %s5, [#allocation5], 128, 128, 8
    $region37: #{tpu_custom_call.1} parent=1 // pred_fallthru
      _
    // Predicated region
    $region38: #{tpu_custom_call.1} parent=1 // pred_check
      _
    $region39: #{tpu_custom_call.1} parent=1 // pred_check_branch
      %345 = sbr.rel (0) target = $region41
    $region40: #{tpu_custom_call.1} parent=1 // pred_region
      %s347 = ssub.s32 16, 16
      %348 = vsyncadd [#allocation11], %s347
      %s350 = sshll.u32 [#allocation10], 4
      %s351 = int_to_ptr.vmem [resolvable:$true] %s350
      %353 = dma.vmem_to_hbm [thread:$0]  %s351, 16, %s6, [#allocation11]
    $region41: #{tpu_custom_call.1} parent=1 // pred_fallthru
      _
    // Predicated region
    $region42: #{tpu_custom_call.1} parent=1 // pred_check
      _
    $region43: #{tpu_custom_call.1} parent=1 // pred_check_branch
      %355 = sbr.rel (0) target = $region45
    $region44: #{tpu_custom_call.1} parent=1 // pred_region
      %356 = dma.done [#allocation5], 512
    $region45: #{tpu_custom_call.1} parent=1 // pred_fallthru
      _
    // Predicated region
    $region46: #{tpu_custom_call.1} parent=1 // pred_check
      _
    $region47: #{tpu_custom_call.1} parent=1 // pred_check_branch
      %358 = sbr.rel (0) target = $region49
    $region48: #{tpu_custom_call.1} parent=1 // pred_region
      %359 = dma.done [#allocation11], 16
    $region49: #{tpu_custom_call.1} parent=1 // pred_fallthru
      _
    %360 = vsyncpa [#allocation4], 1
    %361 = vsyncpa [#allocation7], 1
    %362 = vsyncpa [#allocation5], 1
    %363 = vsyncpa [#allocation11], 1

</llo_original>
